<compile_context>
chip_gen: v7x
topology: tpu7x:2x2x1
jax: 0.10.0
libtpu: 0.0.40
codegen_flags: <defaults>
</compile_context>

<pallas_src>
import jax
import jax.numpy as jnp
from jax.experimental import pallas as pl
from jax.experimental.pallas import tpu as pltpu


def resblock_kernel(x_ref, t1_ref, b1_ref, t2_ref, b2_ref, o_ref, buf):
    # x_ref : (1, H, W*C)         row-flattened input for one batch element
    # t1_ref: (3, W*C, W*Cout)    block-Toeplitz conv1 weights (one per dy)
    # b1_ref: (1, W*Cout)         conv1 bias tiled across W
    # t2_ref: (3, W*Cout, W*Cout) block-Toeplitz conv2 weights
    # b2_ref: (1, W*Cout)
    # o_ref : (1, H, W*Cout)
    # buf   : (H+2, W*C) VMEM scratch; rows 0 and H+1 are the zero halo
    _, H, WC = x_ref.shape

    # Zero only the two halo rows (cheap; done every step so it is safe even
    # if the 'parallel' batch axis is split across cores).  Interior rows are
    # fully overwritten below.
    zero_row = jnp.zeros((1, WC), jnp.float32)
    buf[0:1, :] = zero_row
    buf[H + 1:H + 2, :] = zero_row

    x = x_ref[0]                       # (H, W*C), aligned load
    buf[1:H + 1, :] = x

    # ---- conv1: three banded matmuls (K = N = W*C) + bias + ReLU ----
    acc1 = (jnp.dot(buf[0:H, :], t1_ref[0], preferred_element_type=jnp.float32)
            + jnp.dot(buf[1:H + 1, :], t1_ref[1], preferred_element_type=jnp.float32)
            + jnp.dot(buf[2:H + 2, :], t1_ref[2], preferred_element_type=jnp.float32))
    y1 = jnp.maximum(acc1 + b1_ref[...], 0.0)

    # Re-use the same scratch for the conv2 input (halo rows stay zero).
    buf[1:H + 1, :] = y1

    # ---- conv2 ----
    acc2 = (jnp.dot(buf[0:H, :], t2_ref[0], preferred_element_type=jnp.float32)
            + jnp.dot(buf[1:H + 1, :], t2_ref[1], preferred_element_type=jnp.float32)
            + jnp.dot(buf[2:H + 2, :], t2_ref[2], preferred_element_type=jnp.float32))

    # ---- residual add (aligned, unpadded x) + lane-dense store ----
    o_ref[0] = x + acc2 + b2_ref[...]


def _toeplitz_weights(w, W):
    """w: (kH, kW, Cin, Cout) HWIO -> (kH, W*Cin, W*Cout) banded matrices with
    'SAME' horizontal zero-padding baked in."""
    kH, kW, Cin, Cout = w.shape
    pad = (kW - 1) // 2
    rows = []
    for dy in range(kH):
        t = jnp.zeros((W * Cin, W * Cout), w.dtype)
        for dx in range(kW):
            # shift[xin, x] = 1  iff  xin == x + dx - pad  (taps falling
            # outside [0, W) are simply absent == zero padding)
            shift = jnp.eye(W, k=pad - dx, dtype=w.dtype)
            t = t + jnp.kron(shift, w[dy, dx])
        rows.append(t)
    return jnp.stack(rows, axis=0)


def resblock_forward(x_nchw, w1, b1, w2, b2):
    """x_nchw: (N, C, H, W) float32.  w*: (3, 3, Cin, Cout) HWIO.  b*: (Cout,)."""
    N, C, H, W = x_nchw.shape
    Cout = w1.shape[-1]
    assert C == Cout, "ResBlock requires in_channels == out_channels"

    # NCHW -> row-flattened (N, H, W*C), channels innermost.  No HBM pad pass.
    x_rows = jnp.transpose(x_nchw, (0, 2, 3, 1)).reshape(N, H, W * C)
    x_rows = x_rows.astype(jnp.float32)

    t1 = _toeplitz_weights(w1.astype(jnp.float32), W)     # (3, W*C, W*Cout)
    t2 = _toeplitz_weights(w2.astype(jnp.float32), W)     # (3, W*Cout, W*Cout)
    b1_row = jnp.tile(b1.astype(jnp.float32), W).reshape(1, W * Cout)
    b2_row = jnp.tile(b2.astype(jnp.float32), W).reshape(1, W * Cout)

    out_rows = pl.pallas_call(
        resblock_kernel,
        out_shape=jax.ShapeDtypeStruct((N, H, W * Cout), jnp.float32),
        grid_spec=pltpu.PrefetchScalarGridSpec(
            num_scalar_prefetch=0,
            grid=(N,),
            in_specs=[
                pl.BlockSpec((1, H, W * C), lambda b: (b, 0, 0)),
                pl.BlockSpec((3, W * C, W * Cout), lambda b: (0, 0, 0)),
                pl.BlockSpec((1, W * Cout), lambda b: (0, 0)),
                pl.BlockSpec((3, W * Cout, W * Cout), lambda b: (0, 0, 0)),
                pl.BlockSpec((1, W * Cout), lambda b: (0, 0)),
            ],
            out_specs=pl.BlockSpec((1, H, W * Cout), lambda b: (b, 0, 0)),
            scratch_shapes=[pltpu.VMEM((H + 2, W * C), jnp.float32)],
        ),
        compiler_params=pltpu.CompilerParams(
            dimension_semantics=("parallel",)),
    )(x_rows, t1, b1_row, t2, b2_row)

    out = out_rows.reshape(N, H, W, Cout)
    return jnp.transpose(out, (0, 3, 1, 2))


def _reference(x_nchw, w1, b1, w2, b2):
    # Pure-JAX NHWC reference via lax.conv for a correctness check.
    x = jnp.transpose(x_nchw, (0, 2, 3, 1))
    dn = jax.lax.conv_dimension_numbers(x.shape, w1.shape,
                                        ("NHWC", "HWIO", "NHWC"))
    y = jax.lax.conv_general_dilated(x, w1, (1, 1), "SAME",
                                     dimension_numbers=dn) + b1
    y = jnp.maximum(y, 0.0)
    y = jax.lax.conv_general_dilated(y, w2, (1, 1), "SAME",
                                     dimension_numbers=dn) + b2
    return jnp.transpose(x + y, (0, 3, 1, 2))


if __name__ == "__main__":
    N, C, H, W = 2, 4, 16, 16  # in_channels == out_channels (ResBlock assert)
    key = jax.random.PRNGKey(0)
    kx, k1, k2, k3, k4 = jax.random.split(key, 5)

    x = jax.random.normal(kx, (N, C, H, W), jnp.float32)
    fan_in = C * 3 * 3
    w1 = jax.random.normal(k1, (3, 3, C, C), jnp.float32) / jnp.sqrt(fan_in)
    b1 = jax.random.normal(k2, (C,), jnp.float32) * 0.1
    w2 = jax.random.normal(k3, (3, 3, C, C), jnp.float32) / jnp.sqrt(fan_in)
    b2 = jax.random.normal(k4, (C,), jnp.float32) * 0.1

    out = resblock_forward(x, w1, b1, w2, b2)
    out = jax.block_until_ready(out)

    ref = jax.block_until_ready(_reference(x, w1, b1, w2, b2))
    assert out.shape == (N, C, H, W)
    assert jnp.allclose(out, ref, atol=1e-4, rtol=1e-4)

    print("KERNEL_OK")
</pallas_src>

<mosaic_0001>
module attributes {stable_mosaic.version = 11 : i64} {
  func.func @resblock_kernel(%arg0: i32, %arg1: memref<1x16x64xf32, #tpu.memory_space<vmem>>, %arg2: memref<3x64x64xf32, #tpu.memory_space<vmem>>, %arg3: memref<1x64xf32, #tpu.memory_space<vmem>>, %arg4: memref<3x64x64xf32, #tpu.memory_space<vmem>>, %arg5: memref<1x64xf32, #tpu.memory_space<vmem>>, %arg6: memref<1x16x64xf32, #tpu.memory_space<vmem>>, %arg7: memref<18x64xf32, #tpu.memory_space<vmem>>) attributes {dimension_semantics = [#tpu.dimension_semantics<parallel>], iteration_bounds = array<i64: 2>, scalar_prefetch = 0 : i64, scratch_operands = 1 : i64, tpu.core_type = #tpu.core_type<tc>, window_params = [{transform_indices = @transform_0, window_bounds = array<i64: 1, 16, 64>}, {pipeline_mode = #tpu.pipeline_mode<synchronous>, transform_indices = @transform_1, window_bounds = array<i64: 3, 64, 64>}, {pipeline_mode = #tpu.pipeline_mode<synchronous>, transform_indices = @transform_2, window_bounds = array<i64: 1, 64>}, {pipeline_mode = #tpu.pipeline_mode<synchronous>, transform_indices = @transform_3, window_bounds = array<i64: 3, 64, 64>}, {pipeline_mode = #tpu.pipeline_mode<synchronous>, transform_indices = @transform_4, window_bounds = array<i64: 1, 64>}, {transform_indices = @transform_5, window_bounds = array<i64: 1, 16, 64>}]} {
    %cst = arith.constant 0.000000e+00 : f32
    %0 = vector.broadcast %cst : f32 to vector<1x64xf32>
    %c0 = arith.constant 0 : index
    %c0_0 = arith.constant 0 : index
    %1 = vector.load %arg7[%c0, %c0_0] : memref<18x64xf32, #tpu.memory_space<vmem>>, vector<1x64xf32>
    tpu.vector_store %arg7[%c0, %c0_0], %0 {strides = array<i32>} : memref<18x64xf32, #tpu.memory_space<vmem>>, vector<1x64xf32>,
    %c17 = arith.constant 17 : index
    %c0_1 = arith.constant 0 : index
    %2 = vector.load %arg7[%c17, %c0_1] : memref<18x64xf32, #tpu.memory_space<vmem>>, vector<1x64xf32>
    tpu.vector_store %arg7[%c17, %c0_1], %0 {strides = array<i32>} : memref<18x64xf32, #tpu.memory_space<vmem>>, vector<1x64xf32>,
    %c0_2 = arith.constant 0 : index
    %c0_3 = arith.constant 0 : index
    %c0_4 = arith.constant 0 : index
    %3 = vector.load %arg1[%c0_2, %c0_3, %c0_4] : memref<1x16x64xf32, #tpu.memory_space<vmem>>, vector<1x16x64xf32>
    %4 = vector.shape_cast %3 : vector<1x16x64xf32> to vector<16x64xf32>
    %c1 = arith.constant 1 : index
    %c0_5 = arith.constant 0 : index
    %5 = vector.load %arg7[%c1, %c0_5] : memref<18x64xf32, #tpu.memory_space<vmem>>, vector<16x64xf32>
    tpu.vector_store %arg7[%c1, %c0_5], %4 {strides = array<i32>} : memref<18x64xf32, #tpu.memory_space<vmem>>, vector<16x64xf32>,
    %c0_6 = arith.constant 0 : index
    %c0_7 = arith.constant 0 : index
    %6 = vector.load %arg7[%c0_6, %c0_7] : memref<18x64xf32, #tpu.memory_space<vmem>>, vector<16x64xf32>
    %c0_8 = arith.constant 0 : index
    %c0_9 = arith.constant 0 : index
    %c0_10 = arith.constant 0 : index
    %7 = vector.load %arg2[%c0_8, %c0_9, %c0_10] : memref<3x64x64xf32, #tpu.memory_space<vmem>>, vector<1x64x64xf32>
    %8 = vector.shape_cast %7 : vector<1x64x64xf32> to vector<64x64xf32>
    %cst_11 = arith.constant dense<0.000000e+00> : vector<16x64xf32>
    %9 = tpu.matmul %6, %8, %cst_11 {dimension_numbers = #tpu.dot_dimension_numbers<[1], [0], [0], [1], [0, 0, 1, 1], [], []>} : vector<16x64xf32>, vector<64x64xf32>, vector<16x64xf32> -> vector<16x64xf32>
    %c1_12 = arith.constant 1 : index
    %c0_13 = arith.constant 0 : index
    %10 = vector.load %arg7[%c1_12, %c0_13] : memref<18x64xf32, #tpu.memory_space<vmem>>, vector<16x64xf32>
    %c1_14 = arith.constant 1 : index
    %c0_15 = arith.constant 0 : index
    %c0_16 = arith.constant 0 : index
    %11 = vector.load %arg2[%c1_14, %c0_15, %c0_16] : memref<3x64x64xf32, #tpu.memory_space<vmem>>, vector<1x64x64xf32>
    %12 = vector.shape_cast %11 : vector<1x64x64xf32> to vector<64x64xf32>
    %cst_17 = arith.constant dense<0.000000e+00> : vector<16x64xf32>
    %13 = tpu.matmul %10, %12, %cst_17 {dimension_numbers = #tpu.dot_dimension_numbers<[1], [0], [0], [1], [0, 0, 1, 1], [], []>} : vector<16x64xf32>, vector<64x64xf32>, vector<16x64xf32> -> vector<16x64xf32>
    %14 = arith.addf %9, %13 : vector<16x64xf32>
    %c2 = arith.constant 2 : index
    %c0_18 = arith.constant 0 : index
    %15 = vector.load %arg7[%c2, %c0_18] : memref<18x64xf32, #tpu.memory_space<vmem>>, vector<16x64xf32>
    %c2_19 = arith.constant 2 : index
    %c0_20 = arith.constant 0 : index
    %c0_21 = arith.constant 0 : index
    %16 = vector.load %arg2[%c2_19, %c0_20, %c0_21] : memref<3x64x64xf32, #tpu.memory_space<vmem>>, vector<1x64x64xf32>
    %17 = vector.shape_cast %16 : vector<1x64x64xf32> to vector<64x64xf32>
    %cst_22 = arith.constant dense<0.000000e+00> : vector<16x64xf32>
    %18 = tpu.matmul %15, %17, %cst_22 {dimension_numbers = #tpu.dot_dimension_numbers<[1], [0], [0], [1], [0, 0, 1, 1], [], []>} : vector<16x64xf32>, vector<64x64xf32>, vector<16x64xf32> -> vector<16x64xf32>
    %19 = arith.addf %14, %18 : vector<16x64xf32>
    %c0_23 = arith.constant 0 : index
    %c0_24 = arith.constant 0 : index
    %20 = vector.load %arg3[%c0_23, %c0_24] : memref<1x64xf32, #tpu.memory_space<vmem>>, vector<1x64xf32>
    %21 = vector.broadcast %20 : vector<1x64xf32> to vector<16x64xf32>
    %22 = arith.addf %19, %21 : vector<16x64xf32>
    %cst_25 = arith.constant 0.000000e+00 : f32
    %23 = vector.broadcast %cst_25 : f32 to vector<16x64xf32>
    %24 = arith.maximumf %22, %23 : vector<16x64xf32>
    %c1_26 = arith.constant 1 : index
    %c0_27 = arith.constant 0 : index
    %25 = vector.load %arg7[%c1_26, %c0_27] : memref<18x64xf32, #tpu.memory_space<vmem>>, vector<16x64xf32>
    tpu.vector_store %arg7[%c1_26, %c0_27], %24 {strides = array<i32>} : memref<18x64xf32, #tpu.memory_space<vmem>>, vector<16x64xf32>,
    %c0_28 = arith.constant 0 : index
    %c0_29 = arith.constant 0 : index
    %26 = vector.load %arg7[%c0_28, %c0_29] : memref<18x64xf32, #tpu.memory_space<vmem>>, vector<16x64xf32>
    %c0_30 = arith.constant 0 : index
    %c0_31 = arith.constant 0 : index
    %c0_32 = arith.constant 0 : index
    %27 = vector.load %arg4[%c0_30, %c0_31, %c0_32] : memref<3x64x64xf32, #tpu.memory_space<vmem>>, vector<1x64x64xf32>
    %28 = vector.shape_cast %27 : vector<1x64x64xf32> to vector<64x64xf32>
    %cst_33 = arith.constant dense<0.000000e+00> : vector<16x64xf32>
    %29 = tpu.matmul %26, %28, %cst_33 {dimension_numbers = #tpu.dot_dimension_numbers<[1], [0], [0], [1], [0, 0, 1, 1], [], []>} : vector<16x64xf32>, vector<64x64xf32>, vector<16x64xf32> -> vector<16x64xf32>
    %c1_34 = arith.constant 1 : index
    %c0_35 = arith.constant 0 : index
    %30 = vector.load %arg7[%c1_34, %c0_35] : memref<18x64xf32, #tpu.memory_space<vmem>>, vector<16x64xf32>
    %c1_36 = arith.constant 1 : index
    %c0_37 = arith.constant 0 : index
    %c0_38 = arith.constant 0 : index
    %31 = vector.load %arg4[%c1_36, %c0_37, %c0_38] : memref<3x64x64xf32, #tpu.memory_space<vmem>>, vector<1x64x64xf32>
    %32 = vector.shape_cast %31 : vector<1x64x64xf32> to vector<64x64xf32>
    %cst_39 = arith.constant dense<0.000000e+00> : vector<16x64xf32>
    %33 = tpu.matmul %30, %32, %cst_39 {dimension_numbers = #tpu.dot_dimension_numbers<[1], [0], [0], [1], [0, 0, 1, 1], [], []>} : vector<16x64xf32>, vector<64x64xf32>, vector<16x64xf32> -> vector<16x64xf32>
    %34 = arith.addf %29, %33 : vector<16x64xf32>
    %c2_40 = arith.constant 2 : index
    %c0_41 = arith.constant 0 : index
    %35 = vector.load %arg7[%c2_40, %c0_41] : memref<18x64xf32, #tpu.memory_space<vmem>>, vector<16x64xf32>
    %c2_42 = arith.constant 2 : index
    %c0_43 = arith.constant 0 : index
    %c0_44 = arith.constant 0 : index
    %36 = vector.load %arg4[%c2_42, %c0_43, %c0_44] : memref<3x64x64xf32, #tpu.memory_space<vmem>>, vector<1x64x64xf32>
    %37 = vector.shape_cast %36 : vector<1x64x64xf32> to vector<64x64xf32>
    %cst_45 = arith.constant dense<0.000000e+00> : vector<16x64xf32>
    %38 = tpu.matmul %35, %37, %cst_45 {dimension_numbers = #tpu.dot_dimension_numbers<[1], [0], [0], [1], [0, 0, 1, 1], [], []>} : vector<16x64xf32>, vector<64x64xf32>, vector<16x64xf32> -> vector<16x64xf32>
    %39 = arith.addf %34, %38 : vector<16x64xf32>
    %40 = arith.addf %4, %39 : vector<16x64xf32>
    %c0_46 = arith.constant 0 : index
    %c0_47 = arith.constant 0 : index
    %41 = vector.load %arg5[%c0_46, %c0_47] : memref<1x64xf32, #tpu.memory_space<vmem>>, vector<1x64xf32>
    %42 = vector.broadcast %41 : vector<1x64xf32> to vector<16x64xf32>
    %43 = arith.addf %40, %42 : vector<16x64xf32>
    %c0_48 = arith.constant 0 : index
    %c0_49 = arith.constant 0 : index
    %c0_50 = arith.constant 0 : index
    %44 = vector.load %arg6[%c0_48, %c0_49, %c0_50] : memref<1x16x64xf32, #tpu.memory_space<vmem>>, vector<1x16x64xf32>
    %45 = vector.shape_cast %44 : vector<1x16x64xf32> to vector<16x64xf32>
    %46 = vector.shape_cast %43 : vector<16x64xf32> to vector<1x16x64xf32>
    tpu.vector_store %arg6[%c0_48, %c0_49, %c0_50], %46 {strides = array<i32>} : memref<1x16x64xf32, #tpu.memory_space<vmem>>, vector<1x16x64xf32>,
    return
  }
  func.func @transform_0(%arg0: i32) -> (i32, i32, i32) {
    %c0_i32 = arith.constant 0 : i32
    %c0_i32_0 = arith.constant 0 : i32
    %c0_i32_1 = arith.constant 0 : i32
    return %arg0, %c0_i32, %c0_i32_0 : i32, i32, i32
  }
  func.func @transform_1(%arg0: i32) -> (i32, i32, i32) {
    %c0_i32 = arith.constant 0 : i32
    %c0_i32_0 = arith.constant 0 : i32
    %c0_i32_1 = arith.constant 0 : i32
    %c0_i32_2 = arith.constant 0 : i32
    return %c0_i32, %c0_i32_0, %c0_i32_1 : i32, i32, i32
  }
  func.func @transform_2(%arg0: i32) -> (i32, i32) {
    %c0_i32 = arith.constant 0 : i32
    %c0_i32_0 = arith.constant 0 : i32
    %c0_i32_1 = arith.constant 0 : i32
    return %c0_i32, %c0_i32_0 : i32, i32
  }
  func.func @transform_3(%arg0: i32) -> (i32, i32, i32) {
    %c0_i32 = arith.constant 0 : i32
    %c0_i32_0 = arith.constant 0 : i32
    %c0_i32_1 = arith.constant 0 : i32
    %c0_i32_2 = arith.constant 0 : i32
    return %c0_i32, %c0_i32_0, %c0_i32_1 : i32, i32, i32
  }
  func.func @transform_4(%arg0: i32) -> (i32, i32) {
    %c0_i32 = arith.constant 0 : i32
    %c0_i32_0 = arith.constant 0 : i32
    %c0_i32_1 = arith.constant 0 : i32
    return %c0_i32, %c0_i32_0 : i32, i32
  }
  func.func @transform_5(%arg0: i32) -> (i32, i32, i32) {
    %c0_i32 = arith.constant 0 : i32
    %c0_i32_0 = arith.constant 0 : i32
    %c0_i32_1 = arith.constant 0 : i32
    return %arg0, %c0_i32, %c0_i32_0 : i32, i32, i32
  }
}

</mosaic_0001>

<llo_original>
// kernel: tpu_custom_call.1
$region0: #{tpu_custom_call.1}
  #allocation0 [shape = 'u32[]', space=smem, size = 0x4, offset = 0x4, fixed_abs, tag = 'smem constant byte address 0x4 - core index']
  #allocation1 [shape = 'u32[144,128]{1,0:T(1,128)}', space=vmem, size = 0x12000, scoped, tag = 'internal scratch']
  #allocation2 [shape = 'f32[18,64]{1,0:T(8,128)}', space=vmem, size = 0x3000, scoped, tag = 'scratch operand']
  %s0 = inlined_call_operand.hbm [shape: f32[2,16,64], index: 0, kind: input, shape index: {}]
  %s1 = inlined_call_operand.hbm [shape: f32[3,64,64], index: 1, kind: input, shape index: {}]
  %s2 = inlined_call_operand.vmem [shape: f32[1,64], index: 2, kind: input, shape index: {}]
  %s3 = inlined_call_operand.hbm [shape: f32[3,64,64], index: 3, kind: input, shape index: {}]
  %s4 = inlined_call_operand.vmem [shape: f32[1,64], index: 4, kind: input, shape index: {}]
  %s5 = inlined_call_operand.hbm [shape: f32[2,16,64], index: 5, kind: output, shape index: {}]
  %s6 = sld [smem:[#allocation0]]
  $region65: #{tpu_custom_call.1} parent=0
    _
  %s8 = ssub.s32 1, %s6
  %s9 = scalar_select 0, %s8, %s6
  $region1: #{tpu_custom_call.1} parent=0
    #allocation3 [shape = 'u8[16384]{0}', space=vmem, size = 0x4000, scoped, tag = 'input window, operand 0']
    #allocation4 [shape = 's32[2]{0}', space=sflag, size = 0x8, scoped, tag = 'scoped memory for tpu_custom_call.1']
    #allocation5 [shape = 's32[2]{0}', space=sflag, size = 0x8, scoped, tag = 'scoped memory for tpu_custom_call.1']
    #allocation6 [shape = 'u8[98304]{0}', space=vmem, size = 0x18000, scoped, tag = 'input window, operand 1, single buffered']
    #allocation7 [shape = 's32[1]{0}', space=sflag, size = 0x4, scoped, tag = 'scoped memory for tpu_custom_call.1']
    #allocation8 [shape = 'u8[98304]{0}', space=vmem, size = 0x18000, scoped, tag = 'input window, operand 3, single buffered']
    #allocation9 [shape = 'u8[16384]{0}', space=vmem, size = 0x4000, scoped, tag = 'output window, operand 0']
    %10 = vsyncpa [#allocation4], 0
    %s11 = scalar_lea.sflag [#allocation4], 1
    %12 = vsyncpa %s11, 0
    %13 = vsyncpa [#allocation7], 0
    %14 = vsyncpa [#allocation5], 0
    %s15 = scalar_lea.sflag [#allocation5], 1
    %16 = vsyncpa %s15, 0
    loop: start=0, step=1, limit=4
    $region2: #{tpu_custom_call.1} parent=1 // loop_pre_header
      _
    $region3: #{tpu_custom_call.1} parent=1 // loop_header
      %s18 = sphi 0, %s22
      %p19 = scmp.ge.s32.totalorder %s18, 4
      %s28 = sphi 0, %s30
      %s31 = sphi 0, %s28
      %s32 = sphi 0, %s31
      %s48 = sphi 0, %s32
      %s52 = sphi 0, %s52
      %s54 = sphi 0, %s52
      %s55 = sphi 0, %s54
      %s69 = sphi 0, %s55
      %s73 = sphi 0, %s73
      %s75 = sphi 0, %s73
      %s76 = sphi 0, %s75
      %s90 = sphi 0, %s76
      %s94 = sphi 0, %s94
      %s96 = sphi 0, %s94
      %s97 = sphi 0, %s96
      %s111 = sphi 0, %s97
      %s115 = sphi 0, %s115
      %s117 = sphi 0, %s115
      %s118 = sphi 0, %s117
      %s132 = sphi 0, %s118
      %s138 = sphi 0, %s140
      %s141 = sphi 0, %s138
      %s142 = sphi 0, %s141
      %s158 = sphi 0, %s142
    $region4: #{tpu_custom_call.1} parent=1 // loop_header_branch
      %21 = sbr.rel (%p19) target = $region8
    $region5: #{tpu_custom_call.1} parent=1 // loop_body
      %s23 = ssub.s32 %s18, 1
      %s24 = ssub.s32 %s18, 2
      %s25 = sadd.s32 %s18, 1
      %s26 = ssub.s32 %s18, %s25
      %p27 = scmp.eq.s32.totalorder %s26, 0
      %s29 = sadd.s32 %s28, 1
      %s30 = scalar_select %p27, %s28, %s29
      %p33 = pneg %p27
      %p34 = scmp.eq.s32.totalorder %s18, 1
      %p35 = por %p33, %p34
      %p36 = scmp.ne.s32.totalorder %s28, %s31
      %p37 = scmp.eq.s32.totalorder %s18, 0
      %p38 = por %p36, %p37
      %p39 = scmp.ne.s32.totalorder %s28, %s31
      %p40 = scmp.eq.s32.totalorder %s23, 1
      %p41 = por %p39, %p40
      %p42 = scmp.ne.s32.totalorder %s31, %s32
      %p43 = scmp.eq.s32.totalorder %s23, 0
      %p44 = por %p42, %p43
      %p45 = scmp.ne.s32.totalorder %s31, %s32
      %p46 = scmp.eq.s32.totalorder %s24, 1
      %p47 = por %p45, %p46
      %p49 = scmp.ne.s32.totalorder %s32, %s48
      %p50 = scmp.eq.s32.totalorder %s24, 0
      %p51 = por %p49, %p50
      %s53 = sadd.s32 %s52, 1
      %p56 = scmp.eq.s32.totalorder %s18, 1
      %p57 = scmp.ne.s32.totalorder %s52, %s54
      %p58 = scmp.eq.s32.totalorder %s18, 0
      %p59 = por %p57, %p58
      %p60 = scmp.ne.s32.totalorder %s52, %s54
      %p61 = scmp.eq.s32.totalorder %s23, 1
      %p62 = por %p60, %p61
      %p63 = scmp.ne.s32.totalorder %s54, %s55
      %p64 = scmp.eq.s32.totalorder %s23, 0
      %p65 = por %p63, %p64
      %p66 = scmp.ne.s32.totalorder %s54, %s55
      %p67 = scmp.eq.s32.totalorder %s24, 1
      %p68 = por %p66, %p67
      %p70 = scmp.ne.s32.totalorder %s55, %s69
      %p71 = scmp.eq.s32.totalorder %s24, 0
      %p72 = por %p70, %p71
      %s74 = sadd.s32 %s73, 1
      %p77 = scmp.eq.s32.totalorder %s18, 1
      %p78 = scmp.ne.s32.totalorder %s73, %s75
      %p79 = scmp.eq.s32.totalorder %s18, 0
      %p80 = por %p78, %p79
      %p81 = scmp.ne.s32.totalorder %s73, %s75
      %p82 = scmp.eq.s32.totalorder %s23, 1
      %p83 = por %p81, %p82
      %p84 = scmp.ne.s32.totalorder %s75, %s76
      %p85 = scmp.eq.s32.totalorder %s23, 0
      %p86 = por %p84, %p85
      %p87 = scmp.ne.s32.totalorder %s75, %s76
      %p88 = scmp.eq.s32.totalorder %s24, 1
      %p89 = por %p87, %p88
      %p91 = scmp.ne.s32.totalorder %s76, %s90
      %p92 = scmp.eq.s32.totalorder %s24, 0
      %p93 = por %p91, %p92
      %s95 = sadd.s32 %s94, 1
      %p98 = scmp.eq.s32.totalorder %s18, 1
      %p99 = scmp.ne.s32.totalorder %s94, %s96
      %p100 = scmp.eq.s32.totalorder %s18, 0
      %p101 = por %p99, %p100
      %p102 = scmp.ne.s32.totalorder %s94, %s96
      %p103 = scmp.eq.s32.totalorder %s23, 1
      %p104 = por %p102, %p103
      %p105 = scmp.ne.s32.totalorder %s96, %s97
      %p106 = scmp.eq.s32.totalorder %s23, 0
      %p107 = por %p105, %p106
      %p108 = scmp.ne.s32.totalorder %s96, %s97
      %p109 = scmp.eq.s32.totalorder %s24, 1
      %p110 = por %p108, %p109
      %p112 = scmp.ne.s32.totalorder %s97, %s111
      %p113 = scmp.eq.s32.totalorder %s24, 0
      %p114 = por %p112, %p113
      %s116 = sadd.s32 %s115, 1
      %p119 = scmp.eq.s32.totalorder %s18, 1
      %p120 = scmp.ne.s32.totalorder %s115, %s117
      %p121 = scmp.eq.s32.totalorder %s18, 0
      %p122 = por %p120, %p121
      %p123 = scmp.ne.s32.totalorder %s115, %s117
      %p124 = scmp.eq.s32.totalorder %s23, 1
      %p125 = por %p123, %p124
      %p126 = scmp.ne.s32.totalorder %s117, %s118
      %p127 = scmp.eq.s32.totalorder %s23, 0
      %p128 = por %p126, %p127
      %p129 = scmp.ne.s32.totalorder %s117, %s118
      %p130 = scmp.eq.s32.totalorder %s24, 1
      %p131 = por %p129, %p130
      %p133 = scmp.ne.s32.totalorder %s118, %s132
      %p134 = scmp.eq.s32.totalorder %s24, 0
      %p135 = por %p133, %p134
      %s136 = ssub.s32 %s18, %s25
      %p137 = scmp.eq.s32.totalorder %s136, 0
      %s139 = sadd.s32 %s138, 1
      %s140 = scalar_select %p137, %s138, %s139
      %p143 = pneg %p137
      %p144 = scmp.eq.s32.totalorder %s18, 1
      %p145 = por %p143, %p144
      %p146 = scmp.ne.s32.totalorder %s138, %s141
      %p147 = scmp.eq.s32.totalorder %s18, 0
      %p148 = por %p146, %p147
      %p149 = scmp.ne.s32.totalorder %s138, %s141
      %p150 = scmp.eq.s32.totalorder %s23, 1
      %p151 = por %p149, %p150
      %p152 = scmp.ne.s32.totalorder %s141, %s142
      %p153 = scmp.eq.s32.totalorder %s23, 0
      %p154 = por %p152, %p153
      %p155 = scmp.ne.s32.totalorder %s141, %s142
      %p156 = scmp.eq.s32.totalorder %s24, 1
      %p157 = por %p155, %p156
      %p159 = scmp.ne.s32.totalorder %s142, %s158
      %p160 = scmp.eq.s32.totalorder %s24, 0
      %p161 = por %p159, %p160
      %p162 = scmp.le.s32.totalorder 1, %s18
      %p163 = scmp.lt.s32.totalorder %s18, 3
      %p164 = pnand %p162, %p163
      %p165 = pneg %p164
      // Predicated region
      $region9: #{tpu_custom_call.1} parent=5 // pred_check
        _
      $region10: #{tpu_custom_call.1} parent=5 // pred_check_branch
        %167 = sbr.rel (%p164) target = $region12
      $region11: #{tpu_custom_call.1} parent=5 // pred_region
        %s168 = ssub.s32 %s18, 1
        // Predicated region
        $region13: #{tpu_custom_call.1} parent=11 // pred_check
          %p169 = pneg %p65
        $region14: #{tpu_custom_call.1} parent=11 // pred_check_branch
          %171 = sbr.rel (%p169) target = $region16
        $region15: #{tpu_custom_call.1} parent=11 // pred_region
          %s173 = ssub.s32 3072, 3072
          %174 = vsyncadd [#allocation7], %s173
          %s175 = sshll.u32 [#allocation6], 4
          %s176 = int_to_ptr.vmem [resolvable:$true] %s175
          %181 = dma.hbm_to_vmem [thread:$0]  %s1, 3072, %s176, [#allocation7], 128, 128, 8
        $region16: #{tpu_custom_call.1} parent=11 // pred_fallthru
          _
        // Predicated region
        $region17: #{tpu_custom_call.1} parent=11 // pred_check
          %p182 = pneg %p86
        $region18: #{tpu_custom_call.1} parent=11 // pred_check_branch
          %184 = sbr.rel (%p182) target = $region20
        $region19: #{tpu_custom_call.1} parent=11 // pred_region
          _
        $region20: #{tpu_custom_call.1} parent=11 // pred_fallthru
          _
        // Predicated region
        $region21: #{tpu_custom_call.1} parent=11 // pred_check
          %p185 = pneg %p107
        $region22: #{tpu_custom_call.1} parent=11 // pred_check_branch
          %187 = sbr.rel (%p185) target = $region24
        $region23: #{tpu_custom_call.1} parent=11 // pred_region
          %s189 = ssub.s32 3072, 3072
          %190 = vsyncadd [#allocation7], %s189
          %s191 = sshll.u32 [#allocation8], 4
          %s192 = int_to_ptr.vmem [resolvable:$true] %s191
          %197 = dma.hbm_to_vmem [thread:$0]  %s3, 3072, %s192, [#allocation7], 128, 128, 8
        $region24: #{tpu_custom_call.1} parent=11 // pred_fallthru
          _
        // Predicated region
        $region25: #{tpu_custom_call.1} parent=11 // pred_check
          %p198 = pneg %p128
        $region26: #{tpu_custom_call.1} parent=11 // pred_check_branch
          %200 = sbr.rel (%p198) target = $region28
        $region27: #{tpu_custom_call.1} parent=11 // pred_region
          _
        $region28: #{tpu_custom_call.1} parent=11 // pred_fallthru
          _
      $region12: #{tpu_custom_call.1} parent=5 // pred_fallthru
        _
      %p201 = scmp.lt.s32.totalorder %s18, 2
      // Predicated region
      $region29: #{tpu_custom_call.1} parent=5 // pred_check
        %p202 = pneg %p201
      $region30: #{tpu_custom_call.1} parent=5 // pred_check_branch
        %204 = sbr.rel (%p202) target = $region32
      $region31: #{tpu_custom_call.1} parent=5 // pred_region
        // Predicated region
        $region33: #{tpu_custom_call.1} parent=31 // pred_check
          %p205 = pneg %p38
        $region34: #{tpu_custom_call.1} parent=31 // pred_check_branch
          %207 = sbr.rel (%p205) target = $region36
        $region35: #{tpu_custom_call.1} parent=31 // pred_region
          %s208 = sand.u32 %s28, 1
          %s209 = scalar_lea.sflag [#allocation4], %s208
          %s210 = sand.u32 %s28, 1
          %s211 = smul.addr %s210, 16
          %s212 = scalar_lea.vmem [#allocation3], %s211
          %s214 = ssub.s32 256, 256
          %215 = vsyncadd %s209, %s214
          %s216 = smul.addr %s18, 2
          %s217 = smul.addr %s216, 128
          %s218 = scalar_lea.hbm %s0, %s217
          %s219 = sshll.u32 %s212, 4
          %s220 = int_to_ptr.vmem [resolvable:$true] %s219
          %225 = dma.hbm_to_vmem [thread:$0]  %s218, 256, %s220, %s209, 128, 128, 8
        $region36: #{tpu_custom_call.1} parent=31 // pred_fallthru
          _
      $region32: #{tpu_custom_call.1} parent=5 // pred_fallthru
        _
      %p226 = scmp.le.s32.totalorder 1, %s18
      %p227 = scmp.lt.s32.totalorder %s18, 3
      %p228 = pnand %p226, %p227
      %p229 = pneg %p228
      // Predicated region
      $region37: #{tpu_custom_call.1} parent=5 // pred_check
        _
      $region38: #{tpu_custom_call.1} parent=5 // pred_check_branch
        %231 = sbr.rel (%p228) target = $region40
      $region39: #{tpu_custom_call.1} parent=5 // pred_region
        %s232 = ssub.s32 %s18, 1
        %s233 = sand.u32 %s31, 1
        %s234 = scalar_lea.sflag [#allocation4], %s233
        %s235 = sand.u32 %s31, 1
        %s236 = smul.addr %s235, 16
        %s237 = scalar_lea.vmem [#allocation3], %s236
        // Predicated region
        $region41: #{tpu_custom_call.1} parent=39 // pred_check
          %p238 = pneg %p44
        $region42: #{tpu_custom_call.1} parent=39 // pred_check_branch
          %240 = sbr.rel (%p238) target = $region44
        $region43: #{tpu_custom_call.1} parent=39 // pred_region
          %241 = dma.done %s234, 256
        $region44: #{tpu_custom_call.1} parent=39 // pred_fallthru
          _
        // Predicated region
        $region45: #{tpu_custom_call.1} parent=39 // pred_check
          %p242 = pneg %p65
        $region46: #{tpu_custom_call.1} parent=39 // pred_check_branch
          %244 = sbr.rel (%p242) target = $region48
        $region47: #{tpu_custom_call.1} parent=39 // pred_region
          %245 = dma.done [#allocation7], 3072
        $region48: #{tpu_custom_call.1} parent=39 // pred_fallthru
          _
        // Predicated region
        $region49: #{tpu_custom_call.1} parent=39 // pred_check
          %p246 = pneg %p107
        $region50: #{tpu_custom_call.1} parent=39 // pred_check_branch
          %248 = sbr.rel (%p246) target = $region52
        $region51: #{tpu_custom_call.1} parent=39 // pred_region
          %249 = dma.done [#allocation7], 3072
        $region52: #{tpu_custom_call.1} parent=39 // pred_fallthru
          _
        %s250 = sand.u32 %s31, 1
        %s251 = scalar_lea.sflag [#allocation4], %s250
        %s252 = sand.u32 %s31, 1
        %s253 = smul.addr %s252, 16
        %s254 = scalar_lea.vmem [#allocation3], %s253
        %p255 = pneg %p44
        %p256 = pneg %p41
        %p257 = pneg %p65
        %p258 = pneg %p62
        %p259 = pneg %p86
        %p260 = pneg %p83
        %p261 = pneg %p107
        %p262 = pneg %p104
        %p263 = pneg %p128
        %p264 = pneg %p125
        %p265 = pneg %p154
        %p266 = pneg %p151
        %s267 = sand.u32 %s141, 1
        %s268 = scalar_lea.sflag [#allocation5], %s267
        %s269 = sand.u32 %s141, 1
        %s270 = smul.addr %s269, 16
        %s271 = scalar_lea.vmem [#allocation9], %s270
        %vm272 = vcmask 516096
        %273 = vst.msk [vmem:[#allocation2] sm:$0x1] %vm272, 0.0
        %274 = vst.msk [vmem:[#allocation2 + $0x11] sm:$0x1] %vm272, 0.0
        %v275 = vld [vmem:[%s237] sm:$0xff]
        %v276 = vld [vmem:[%s237 + $0x8] sm:$0xff]
        %vm277 = vcmask 523264
        %278 = vst.msk [vmem:[#allocation2 + $0x1] sm:$0xff] %vm277, %v275
        %279 = vst.msk [vmem:[#allocation2 + $0x9] sm:$0xff] %vm277, %v276
        %v280 = vld [vmem:[#allocation2] sm:$0xff]
        %v281 = vld [vmem:[#allocation2 + $0x8] sm:$0xff]
        %v282 = vld [vmem:[#allocation6] sm:$0xff]
        %v283 = vld [vmem:[#allocation6 + $0x8] sm:$0xff]
        %v284 = vld [vmem:[#allocation6 + $0x10] sm:$0xff]
        %v285 = vld [vmem:[#allocation6 + $0x18] sm:$0xff]
        %v286 = vld [vmem:[#allocation6 + $0x20] sm:$0xff]
        %v287 = vld [vmem:[#allocation6 + $0x28] sm:$0xff]
        %v288 = vld [vmem:[#allocation6 + $0x30] sm:$0xff]
        %v289 = vld [vmem:[#allocation6 + $0x38] sm:$0xff]
        %v290 = vld [vmem:[#allocation2 + $0x1] sm:$0xff]
        %v291 = vld [vmem:[#allocation2 + $0x9] sm:$0xff]
        %s292 = scalar_lea.vmem [#allocation6], 64
        %v293 = vld [vmem:[%s292] sm:$0xff]
        %v294 = vld [vmem:[%s292 + $0x8] sm:$0xff]
        %v295 = vld [vmem:[%s292 + $0x10] sm:$0xff]
        %v296 = vld [vmem:[%s292 + $0x18] sm:$0xff]
        %v297 = vld [vmem:[%s292 + $0x20] sm:$0xff]
        %v298 = vld [vmem:[%s292 + $0x28] sm:$0xff]
        %v299 = vld [vmem:[%s292 + $0x30] sm:$0xff]
        %v300 = vld [vmem:[%s292 + $0x38] sm:$0xff]
        %v302 = vsel %vm277, %v290, 0
        %v305 = vsel %vm277, %v291, 0
        %307 = vmatprep.subr.mxu0 0.0
        %308 = vmatpush1.msra.mxu0 %v293
        %309 = vmatprep.subr.mxu0 0.0
        %310 = vmatpush1.msra.mxu0 %v294
        %311 = vmatprep.subr.mxu0 0.0
        %312 = vmatpush1.msra.mxu0 %v295
        %313 = vmatprep.subr.mxu0 0.0
        %314 = vmatpush1.msra.mxu0 %v296
        %315 = vmatprep.subr.mxu0 0.0
        %316 = vmatpush1.msra.mxu0 %v297
        %317 = vmatprep.subr.mxu0 0.0
        %318 = vmatpush1.msra.mxu0 %v298
        %319 = vmatprep.subr.mxu0 0.0
        %320 = vmatpush1.msra.mxu0 %v299
        %321 = vmatprep.subr.mxu0 0.0
        %322 = vmatpush1.msra.mxu0 %v300
        %323 = vmatprep.subr.mxu0 0.0
        %324 = vmatpush1.msra.mxu0 0.0
        %325 = vmatprep.subr.mxu0 0.0
        %326 = vmatpush1.msra.mxu0 0.0
        %327 = vmatprep.subr.mxu0 0.0
        %328 = vmatpush1.msra.mxu0 0.0
        %329 = vmatprep.subr.mxu0 0.0
        %330 = vmatpush1.msra.mxu0 0.0
        %331 = vmatprep.subr.mxu0 0.0
        %332 = vmatpush1.msra.mxu0 0.0
        %333 = vmatprep.subr.mxu0 0.0
        %334 = vmatpush1.msra.mxu0 0.0
        %335 = vmatprep.subr.mxu0 0.0
        %336 = vmatpush1.msra.mxu0 0.0
        %337 = vmatprep.subr.mxu0 0.0
        %338 = vmatpush1.msra.mxu0 0.0
        %339 = vmatprep.subr.mxu0 0.0
        %340 = vmatpush1.msra.mxu0 0.0
        %341 = vmatprep.subr.mxu0 0.0
        %342 = vmatpush1.msra.mxu0 0.0
        %343 = vmatprep.subr.mxu0 0.0
        %344 = vmatpush1.msra.mxu0 0.0
        %345 = vmatprep.subr.mxu0 0.0
        %346 = vmatpush1.msra.mxu0 0.0
        %347 = vmatprep.subr.mxu0 0.0
        %348 = vmatpush1.msra.mxu0 0.0
        %349 = vmatprep.subr.mxu0 0.0
        %350 = vmatpush1.msra.mxu0 0.0
        %351 = vmatprep.subr.mxu0 0.0
        %352 = vmatpush1.msra.mxu0 0.0
        %353 = vmatprep.subr.mxu0 0.0
        %354 = vmatpush1.msra.mxu0 0.0
        %355 = vmatprep.subr.mxu0 0.0
        %356 = vmatpush1.msra.mxu0 0.0
        %357 = vmatprep.subr.mxu0 0.0
        %358 = vmatpush1.msra.mxu0 0.0
        %359 = vmatprep.subr.mxu0 0.0
        %360 = vmatpush1.msra.mxu0 0.0
        %361 = vmatprep.subr.mxu0 0.0
        %362 = vmatpush1.msra.mxu0 0.0
        %363 = vmatprep.subr.mxu0 0.0
        %364 = vmatpush1.msra.mxu0 0.0
        %365 = vmatprep.subr.mxu0 0.0
        %366 = vmatpush1.msra.mxu0 0.0
        %367 = vmatprep.subr.mxu0 0.0
        %368 = vmatpush1.msra.mxu0 0.0
        %369 = vmatprep.subr.mxu0 0.0
        %370 = vmatpush1.msra.mxu0 0.0
        %371 = vmatprep.mubr.f32.mxu0 0.0
        %372 = vmatmul.mubr.f32.gmra.mrb[0].mxu0 %v302
        %v373 = vpop.f32.mrb[0].mxu0
        %v374 = vadd.f32 0.0, %v373
        %v375 = vpop.f32.mrb[0].mxu0
        %376 = vmatprep.mubr.f32.mxu0 0.0
        %377 = vmatmul.mubr.f32.gmra.mrb[0].mxu0 %v305
        %v378 = vpop.f32.mrb[0].mxu0
        %v379 = vadd.f32 0.0, %v378
        %v380 = vpop.f32.mrb[0].mxu0
        %381 = vdwg.mxu0
        %v383 = vsel %vm277, %v280, 0
        %v386 = vsel %vm277, %v281, 0
        %388 = vmatprep.subr.mxu0 0.0
        %389 = vmatpush1.msra.mxu0 %v282
        %390 = vmatprep.subr.mxu0 0.0
        %391 = vmatpush1.msra.mxu0 %v283
        %392 = vmatprep.subr.mxu0 0.0
        %393 = vmatpush1.msra.mxu0 %v284
        %394 = vmatprep.subr.mxu0 0.0
        %395 = vmatpush1.msra.mxu0 %v285
        %396 = vmatprep.subr.mxu0 0.0
        %397 = vmatpush1.msra.mxu0 %v286
        %398 = vmatprep.subr.mxu0 0.0
        %399 = vmatpush1.msra.mxu0 %v287
        %400 = vmatprep.subr.mxu0 0.0
        %401 = vmatpush1.msra.mxu0 %v288
        %402 = vmatprep.subr.mxu0 0.0
        %403 = vmatpush1.msra.mxu0 %v289
        %404 = vmatprep.subr.mxu0 0.0
        %405 = vmatpush1.msra.mxu0 0.0
        %406 = vmatprep.subr.mxu0 0.0
        %407 = vmatpush1.msra.mxu0 0.0
        %408 = vmatprep.subr.mxu0 0.0
        %409 = vmatpush1.msra.mxu0 0.0
        %410 = vmatprep.subr.mxu0 0.0
        %411 = vmatpush1.msra.mxu0 0.0
        %412 = vmatprep.subr.mxu0 0.0
        %413 = vmatpush1.msra.mxu0 0.0
        %414 = vmatprep.subr.mxu0 0.0
        %415 = vmatpush1.msra.mxu0 0.0
        %416 = vmatprep.subr.mxu0 0.0
        %417 = vmatpush1.msra.mxu0 0.0
        %418 = vmatprep.subr.mxu0 0.0
        %419 = vmatpush1.msra.mxu0 0.0
        %420 = vmatprep.subr.mxu0 0.0
        %421 = vmatpush1.msra.mxu0 0.0
        %422 = vmatprep.subr.mxu0 0.0
        %423 = vmatpush1.msra.mxu0 0.0
        %424 = vmatprep.subr.mxu0 0.0
        %425 = vmatpush1.msra.mxu0 0.0
        %426 = vmatprep.subr.mxu0 0.0
        %427 = vmatpush1.msra.mxu0 0.0
        %428 = vmatprep.subr.mxu0 0.0
        %429 = vmatpush1.msra.mxu0 0.0
        %430 = vmatprep.subr.mxu0 0.0
        %431 = vmatpush1.msra.mxu0 0.0
        %432 = vmatprep.subr.mxu0 0.0
        %433 = vmatpush1.msra.mxu0 0.0
        %434 = vmatprep.subr.mxu0 0.0
        %435 = vmatpush1.msra.mxu0 0.0
        %436 = vmatprep.subr.mxu0 0.0
        %437 = vmatpush1.msra.mxu0 0.0
        %438 = vmatprep.subr.mxu0 0.0
        %439 = vmatpush1.msra.mxu0 0.0
        %440 = vmatprep.subr.mxu0 0.0
        %441 = vmatpush1.msra.mxu0 0.0
        %442 = vmatprep.subr.mxu0 0.0
        %443 = vmatpush1.msra.mxu0 0.0
        %444 = vmatprep.subr.mxu0 0.0
        %445 = vmatpush1.msra.mxu0 0.0
        %446 = vmatprep.subr.mxu0 0.0
        %447 = vmatpush1.msra.mxu0 0.0
        %448 = vmatprep.subr.mxu0 0.0
        %449 = vmatpush1.msra.mxu0 0.0
        %450 = vmatprep.subr.mxu0 0.0
        %451 = vmatpush1.msra.mxu0 0.0
        %452 = vmatprep.mubr.f32.mxu0 0.0
        %453 = vmatmul.mubr.f32.gmra.mrb[0].mxu0 %v383
        %v454 = vpop.f32.mrb[0].mxu0
        %v455 = vadd.f32 %v374, %v454
        %v456 = vpop.f32.mrb[0].mxu0
        %457 = vmatprep.mubr.f32.mxu0 0.0
        %458 = vmatmul.mubr.f32.gmra.mrb[0].mxu0 %v386
        %v459 = vpop.f32.mrb[0].mxu0
        %v460 = vadd.f32 %v379, %v459
        %v461 = vpop.f32.mrb[0].mxu0
        %462 = vdwg.mxu0
        %v463 = vld [vmem:[#allocation2 + $0x2] sm:$0xff]
        %v464 = vld [vmem:[#allocation2 + $0xa] sm:$0xff]
        %s465 = scalar_lea.vmem [#allocation6], 128
        %v466 = vld [vmem:[%s465] sm:$0xff]
        %v467 = vld [vmem:[%s465 + $0x8] sm:$0xff]
        %v468 = vld [vmem:[%s465 + $0x10] sm:$0xff]
        %v469 = vld [vmem:[%s465 + $0x18] sm:$0xff]
        %v470 = vld [vmem:[%s465 + $0x20] sm:$0xff]
        %v471 = vld [vmem:[%s465 + $0x28] sm:$0xff]
        %v472 = vld [vmem:[%s465 + $0x30] sm:$0xff]
        %v473 = vld [vmem:[%s465 + $0x38] sm:$0xff]
        %v475 = vsel %vm277, %v463, 0
        %v478 = vsel %vm277, %v464, 0
        %480 = vmatprep.subr.mxu0 0.0
        %481 = vmatpush1.msra.mxu0 %v466
        %482 = vmatprep.subr.mxu0 0.0
        %483 = vmatpush1.msra.mxu0 %v467
        %484 = vmatprep.subr.mxu0 0.0
        %485 = vmatpush1.msra.mxu0 %v468
        %486 = vmatprep.subr.mxu0 0.0
        %487 = vmatpush1.msra.mxu0 %v469
        %488 = vmatprep.subr.mxu0 0.0
        %489 = vmatpush1.msra.mxu0 %v470
        %490 = vmatprep.subr.mxu0 0.0
        %491 = vmatpush1.msra.mxu0 %v471
        %492 = vmatprep.subr.mxu0 0.0
        %493 = vmatpush1.msra.mxu0 %v472
        %494 = vmatprep.subr.mxu0 0.0
        %495 = vmatpush1.msra.mxu0 %v473
        %496 = vmatprep.subr.mxu0 0.0
        %497 = vmatpush1.msra.mxu0 0.0
        %498 = vmatprep.subr.mxu0 0.0
        %499 = vmatpush1.msra.mxu0 0.0
        %500 = vmatprep.subr.mxu0 0.0
        %501 = vmatpush1.msra.mxu0 0.0
        %502 = vmatprep.subr.mxu0 0.0
        %503 = vmatpush1.msra.mxu0 0.0
        %504 = vmatprep.subr.mxu0 0.0
        %505 = vmatpush1.msra.mxu0 0.0
        %506 = vmatprep.subr.mxu0 0.0
        %507 = vmatpush1.msra.mxu0 0.0
        %508 = vmatprep.subr.mxu0 0.0
        %509 = vmatpush1.msra.mxu0 0.0
        %510 = vmatprep.subr.mxu0 0.0
        %511 = vmatpush1.msra.mxu0 0.0
        %512 = vmatprep.subr.mxu0 0.0
        %513 = vmatpush1.msra.mxu0 0.0
        %514 = vmatprep.subr.mxu0 0.0
        %515 = vmatpush1.msra.mxu0 0.0
        %516 = vmatprep.subr.mxu0 0.0
        %517 = vmatpush1.msra.mxu0 0.0
        %518 = vmatprep.subr.mxu0 0.0
        %519 = vmatpush1.msra.mxu0 0.0
        %520 = vmatprep.subr.mxu0 0.0
        %521 = vmatpush1.msra.mxu0 0.0
        %522 = vmatprep.subr.mxu0 0.0
        %523 = vmatpush1.msra.mxu0 0.0
        %524 = vmatprep.subr.mxu0 0.0
        %525 = vmatpush1.msra.mxu0 0.0
        %526 = vmatprep.subr.mxu0 0.0
        %527 = vmatpush1.msra.mxu0 0.0
        %528 = vmatprep.subr.mxu0 0.0
        %529 = vmatpush1.msra.mxu0 0.0
        %530 = vmatprep.subr.mxu0 0.0
        %531 = vmatpush1.msra.mxu0 0.0
        %532 = vmatprep.subr.mxu0 0.0
        %533 = vmatpush1.msra.mxu0 0.0
        %534 = vmatprep.subr.mxu0 0.0
        %535 = vmatpush1.msra.mxu0 0.0
        %536 = vmatprep.subr.mxu0 0.0
        %537 = vmatpush1.msra.mxu0 0.0
        %538 = vmatprep.subr.mxu0 0.0
        %539 = vmatpush1.msra.mxu0 0.0
        %540 = vmatprep.subr.mxu0 0.0
        %541 = vmatpush1.msra.mxu0 0.0
        %542 = vmatprep.subr.mxu0 0.0
        %543 = vmatpush1.msra.mxu0 0.0
        %544 = vmatprep.mubr.f32.mxu0 0.0
        %545 = vmatmul.mubr.f32.gmra.mrb[0].mxu0 %v475
        %v546 = vpop.f32.mrb[0].mxu0
        %v547 = vadd.f32 0.0, %v546
        %v548 = vpop.f32.mrb[0].mxu0
        %549 = vmatprep.mubr.f32.mxu0 0.0
        %550 = vmatmul.mubr.f32.gmra.mrb[0].mxu0 %v478
        %v551 = vpop.f32.mrb[0].mxu0
        %v552 = vadd.f32 0.0, %v551
        %v553 = vpop.f32.mrb[0].mxu0
        %554 = vdwg.mxu0
        %v555 = vadd.f32 %v455, %v547
        %v556 = vadd.f32 %v460, %v552
        %v557 = vld [vmem:[%s2] sm:$0x1]
        %v559 = vlaneseq
        %v560 = vshrl.u32 %v559, 7
        %v561 = vsub.s32 0, %v560
        %v562 = vrot.slane %v557, %v561
        %v564 = vadd.f32 %v555, %v562
        %v565 = vadd.f32 %v556, %v562
        %v566 = vmax.f32 %v564, 0.0
        %v567 = vmax.f32 %v565, 0.0
        %568 = vst.msk [vmem:[#allocation2 + $0x1] sm:$0xff] %vm277, %v566
        %569 = vst.msk [vmem:[#allocation2 + $0x9] sm:$0xff] %vm277, %v567
        %v570 = vld [vmem:[#allocation2] sm:$0xff]
        %v571 = vld [vmem:[#allocation2 + $0x8] sm:$0xff]
        %v572 = vld [vmem:[#allocation8] sm:$0xff]
        %v573 = vld [vmem:[#allocation8 + $0x8] sm:$0xff]
        %v574 = vld [vmem:[#allocation8 + $0x10] sm:$0xff]
        %v575 = vld [vmem:[#allocation8 + $0x18] sm:$0xff]
        %v576 = vld [vmem:[#allocation8 + $0x20] sm:$0xff]
        %v577 = vld [vmem:[#allocation8 + $0x28] sm:$0xff]
        %v578 = vld [vmem:[#allocation8 + $0x30] sm:$0xff]
        %v579 = vld [vmem:[#allocation8 + $0x38] sm:$0xff]
        %v580 = vld [vmem:[#allocation2 + $0x1] sm:$0xff]
        %v581 = vld [vmem:[#allocation2 + $0x9] sm:$0xff]
        %s582 = scalar_lea.vmem [#allocation8], 64
        %v583 = vld [vmem:[%s582] sm:$0xff]
        %v584 = vld [vmem:[%s582 + $0x8] sm:$0xff]
        %v585 = vld [vmem:[%s582 + $0x10] sm:$0xff]
        %v586 = vld [vmem:[%s582 + $0x18] sm:$0xff]
        %v587 = vld [vmem:[%s582 + $0x20] sm:$0xff]
        %v588 = vld [vmem:[%s582 + $0x28] sm:$0xff]
        %v589 = vld [vmem:[%s582 + $0x30] sm:$0xff]
        %v590 = vld [vmem:[%s582 + $0x38] sm:$0xff]
        %v592 = vsel %vm277, %v580, 0
        %v595 = vsel %vm277, %v581, 0
        %597 = vmatprep.subr.mxu0 0.0
        %598 = vmatpush1.msra.mxu0 %v583
        %599 = vmatprep.subr.mxu0 0.0
        %600 = vmatpush1.msra.mxu0 %v584
        %601 = vmatprep.subr.mxu0 0.0
        %602 = vmatpush1.msra.mxu0 %v585
        %603 = vmatprep.subr.mxu0 0.0
        %604 = vmatpush1.msra.mxu0 %v586
        %605 = vmatprep.subr.mxu0 0.0
        %606 = vmatpush1.msra.mxu0 %v587
        %607 = vmatprep.subr.mxu0 0.0
        %608 = vmatpush1.msra.mxu0 %v588
        %609 = vmatprep.subr.mxu0 0.0
        %610 = vmatpush1.msra.mxu0 %v589
        %611 = vmatprep.subr.mxu0 0.0
        %612 = vmatpush1.msra.mxu0 %v590
        %613 = vmatprep.subr.mxu0 0.0
        %614 = vmatpush1.msra.mxu0 0.0
        %615 = vmatprep.subr.mxu0 0.0
        %616 = vmatpush1.msra.mxu0 0.0
        %617 = vmatprep.subr.mxu0 0.0
        %618 = vmatpush1.msra.mxu0 0.0
        %619 = vmatprep.subr.mxu0 0.0
        %620 = vmatpush1.msra.mxu0 0.0
        %621 = vmatprep.subr.mxu0 0.0
        %622 = vmatpush1.msra.mxu0 0.0
        %623 = vmatprep.subr.mxu0 0.0
        %624 = vmatpush1.msra.mxu0 0.0
        %625 = vmatprep.subr.mxu0 0.0
        %626 = vmatpush1.msra.mxu0 0.0
        %627 = vmatprep.subr.mxu0 0.0
        %628 = vmatpush1.msra.mxu0 0.0
        %629 = vmatprep.subr.mxu0 0.0
        %630 = vmatpush1.msra.mxu0 0.0
        %631 = vmatprep.subr.mxu0 0.0
        %632 = vmatpush1.msra.mxu0 0.0
        %633 = vmatprep.subr.mxu0 0.0
        %634 = vmatpush1.msra.mxu0 0.0
        %635 = vmatprep.subr.mxu0 0.0
        %636 = vmatpush1.msra.mxu0 0.0
        %637 = vmatprep.subr.mxu0 0.0
        %638 = vmatpush1.msra.mxu0 0.0
        %639 = vmatprep.subr.mxu0 0.0
        %640 = vmatpush1.msra.mxu0 0.0
        %641 = vmatprep.subr.mxu0 0.0
        %642 = vmatpush1.msra.mxu0 0.0
        %643 = vmatprep.subr.mxu0 0.0
        %644 = vmatpush1.msra.mxu0 0.0
        %645 = vmatprep.subr.mxu0 0.0
        %646 = vmatpush1.msra.mxu0 0.0
        %647 = vmatprep.subr.mxu0 0.0
        %648 = vmatpush1.msra.mxu0 0.0
        %649 = vmatprep.subr.mxu0 0.0
        %650 = vmatpush1.msra.mxu0 0.0
        %651 = vmatprep.subr.mxu0 0.0
        %652 = vmatpush1.msra.mxu0 0.0
        %653 = vmatprep.subr.mxu0 0.0
        %654 = vmatpush1.msra.mxu0 0.0
        %655 = vmatprep.subr.mxu0 0.0
        %656 = vmatpush1.msra.mxu0 0.0
        %657 = vmatprep.subr.mxu0 0.0
        %658 = vmatpush1.msra.mxu0 0.0
        %659 = vmatprep.subr.mxu0 0.0
        %660 = vmatpush1.msra.mxu0 0.0
        %661 = vmatprep.mubr.f32.mxu0 0.0
        %662 = vmatmul.mubr.f32.gmra.mrb[0].mxu0 %v592
        %v663 = vpop.f32.mrb[0].mxu0
        %v664 = vadd.f32 0.0, %v663
        %v665 = vpop.f32.mrb[0].mxu0
        %666 = vmatprep.mubr.f32.mxu0 0.0
        %667 = vmatmul.mubr.f32.gmra.mrb[0].mxu0 %v595
        %v668 = vpop.f32.mrb[0].mxu0
        %v669 = vadd.f32 0.0, %v668
        %v670 = vpop.f32.mrb[0].mxu0
        %671 = vdwg.mxu0
        %v673 = vsel %vm277, %v570, 0
        %v676 = vsel %vm277, %v571, 0
        %678 = vmatprep.subr.mxu0 0.0
        %679 = vmatpush1.msra.mxu0 %v572
        %680 = vmatprep.subr.mxu0 0.0
        %681 = vmatpush1.msra.mxu0 %v573
        %682 = vmatprep.subr.mxu0 0.0
        %683 = vmatpush1.msra.mxu0 %v574
        %684 = vmatprep.subr.mxu0 0.0
        %685 = vmatpush1.msra.mxu0 %v575
        %686 = vmatprep.subr.mxu0 0.0
        %687 = vmatpush1.msra.mxu0 %v576
        %688 = vmatprep.subr.mxu0 0.0
        %689 = vmatpush1.msra.mxu0 %v577
        %690 = vmatprep.subr.mxu0 0.0
        %691 = vmatpush1.msra.mxu0 %v578
        %692 = vmatprep.subr.mxu0 0.0
        %693 = vmatpush1.msra.mxu0 %v579
        %694 = vmatprep.subr.mxu0 0.0
        %695 = vmatpush1.msra.mxu0 0.0
        %696 = vmatprep.subr.mxu0 0.0
        %697 = vmatpush1.msra.mxu0 0.0
        %698 = vmatprep.subr.mxu0 0.0
        %699 = vmatpush1.msra.mxu0 0.0
        %700 = vmatprep.subr.mxu0 0.0
        %701 = vmatpush1.msra.mxu0 0.0
        %702 = vmatprep.subr.mxu0 0.0
        %703 = vmatpush1.msra.mxu0 0.0
        %704 = vmatprep.subr.mxu0 0.0
        %705 = vmatpush1.msra.mxu0 0.0
        %706 = vmatprep.subr.mxu0 0.0
        %707 = vmatpush1.msra.mxu0 0.0
        %708 = vmatprep.subr.mxu0 0.0
        %709 = vmatpush1.msra.mxu0 0.0
        %710 = vmatprep.subr.mxu0 0.0
        %711 = vmatpush1.msra.mxu0 0.0
        %712 = vmatprep.subr.mxu0 0.0
        %713 = vmatpush1.msra.mxu0 0.0
        %714 = vmatprep.subr.mxu0 0.0
        %715 = vmatpush1.msra.mxu0 0.0
        %716 = vmatprep.subr.mxu0 0.0
        %717 = vmatpush1.msra.mxu0 0.0
        %718 = vmatprep.subr.mxu0 0.0
        %719 = vmatpush1.msra.mxu0 0.0
        %720 = vmatprep.subr.mxu0 0.0
        %721 = vmatpush1.msra.mxu0 0.0
        %722 = vmatprep.subr.mxu0 0.0
        %723 = vmatpush1.msra.mxu0 0.0
        %724 = vmatprep.subr.mxu0 0.0
        %725 = vmatpush1.msra.mxu0 0.0
        %726 = vmatprep.subr.mxu0 0.0
        %727 = vmatpush1.msra.mxu0 0.0
        %728 = vmatprep.subr.mxu0 0.0
        %729 = vmatpush1.msra.mxu0 0.0
        %730 = vmatprep.subr.mxu0 0.0
        %731 = vmatpush1.msra.mxu0 0.0
        %732 = vmatprep.subr.mxu0 0.0
        %733 = vmatpush1.msra.mxu0 0.0
        %734 = vmatprep.subr.mxu0 0.0
        %735 = vmatpush1.msra.mxu0 0.0
        %736 = vmatprep.subr.mxu0 0.0
        %737 = vmatpush1.msra.mxu0 0.0
        %738 = vmatprep.subr.mxu0 0.0
        %739 = vmatpush1.msra.mxu0 0.0
        %740 = vmatprep.subr.mxu0 0.0
        %741 = vmatpush1.msra.mxu0 0.0
        %742 = vmatprep.mubr.f32.mxu0 0.0
        %743 = vmatmul.mubr.f32.gmra.mrb[0].mxu0 %v673
        %v744 = vpop.f32.mrb[0].mxu0
        %v745 = vadd.f32 %v664, %v744
        %v746 = vpop.f32.mrb[0].mxu0
        %747 = vmatprep.mubr.f32.mxu0 0.0
        %748 = vmatmul.mubr.f32.gmra.mrb[0].mxu0 %v676
        %v749 = vpop.f32.mrb[0].mxu0
        %v750 = vadd.f32 %v669, %v749
        %v751 = vpop.f32.mrb[0].mxu0
        %752 = vdwg.mxu0
        %v753 = vld [vmem:[#allocation2 + $0x2] sm:$0xff]
        %v754 = vld [vmem:[#allocation2 + $0xa] sm:$0xff]
        %s755 = scalar_lea.vmem [#allocation8], 128
        %v756 = vld [vmem:[%s755] sm:$0xff]
        %v757 = vld [vmem:[%s755 + $0x8] sm:$0xff]
        %v758 = vld [vmem:[%s755 + $0x10] sm:$0xff]
        %v759 = vld [vmem:[%s755 + $0x18] sm:$0xff]
        %v760 = vld [vmem:[%s755 + $0x20] sm:$0xff]
        %v761 = vld [vmem:[%s755 + $0x28] sm:$0xff]
        %v762 = vld [vmem:[%s755 + $0x30] sm:$0xff]
        %v763 = vld [vmem:[%s755 + $0x38] sm:$0xff]
        %v765 = vsel %vm277, %v753, 0
        %v768 = vsel %vm277, %v754, 0
        %770 = vmatprep.subr.mxu0 0.0
        %771 = vmatpush1.msra.mxu0 %v756
        %772 = vmatprep.subr.mxu0 0.0
        %773 = vmatpush1.msra.mxu0 %v757
        %774 = vmatprep.subr.mxu0 0.0
        %775 = vmatpush1.msra.mxu0 %v758
        %776 = vmatprep.subr.mxu0 0.0
        %777 = vmatpush1.msra.mxu0 %v759
        %778 = vmatprep.subr.mxu0 0.0
        %779 = vmatpush1.msra.mxu0 %v760
        %780 = vmatprep.subr.mxu0 0.0
        %781 = vmatpush1.msra.mxu0 %v761
        %782 = vmatprep.subr.mxu0 0.0
        %783 = vmatpush1.msra.mxu0 %v762
        %784 = vmatprep.subr.mxu0 0.0
        %785 = vmatpush1.msra.mxu0 %v763
        %786 = vmatprep.subr.mxu0 0.0
        %787 = vmatpush1.msra.mxu0 0.0
        %788 = vmatprep.subr.mxu0 0.0
        %789 = vmatpush1.msra.mxu0 0.0
        %790 = vmatprep.subr.mxu0 0.0
        %791 = vmatpush1.msra.mxu0 0.0
        %792 = vmatprep.subr.mxu0 0.0
        %793 = vmatpush1.msra.mxu0 0.0
        %794 = vmatprep.subr.mxu0 0.0
        %795 = vmatpush1.msra.mxu0 0.0
        %796 = vmatprep.subr.mxu0 0.0
        %797 = vmatpush1.msra.mxu0 0.0
        %798 = vmatprep.subr.mxu0 0.0
        %799 = vmatpush1.msra.mxu0 0.0
        %800 = vmatprep.subr.mxu0 0.0
        %801 = vmatpush1.msra.mxu0 0.0
        %802 = vmatprep.subr.mxu0 0.0
        %803 = vmatpush1.msra.mxu0 0.0
        %804 = vmatprep.subr.mxu0 0.0
        %805 = vmatpush1.msra.mxu0 0.0
        %806 = vmatprep.subr.mxu0 0.0
        %807 = vmatpush1.msra.mxu0 0.0
        %808 = vmatprep.subr.mxu0 0.0
        %809 = vmatpush1.msra.mxu0 0.0
        %810 = vmatprep.subr.mxu0 0.0
        %811 = vmatpush1.msra.mxu0 0.0
        %812 = vmatprep.subr.mxu0 0.0
        %813 = vmatpush1.msra.mxu0 0.0
        %814 = vmatprep.subr.mxu0 0.0
        %815 = vmatpush1.msra.mxu0 0.0
        %816 = vmatprep.subr.mxu0 0.0
        %817 = vmatpush1.msra.mxu0 0.0
        %818 = vmatprep.subr.mxu0 0.0
        %819 = vmatpush1.msra.mxu0 0.0
        %820 = vmatprep.subr.mxu0 0.0
        %821 = vmatpush1.msra.mxu0 0.0
        %822 = vmatprep.subr.mxu0 0.0
        %823 = vmatpush1.msra.mxu0 0.0
        %824 = vmatprep.subr.mxu0 0.0
        %825 = vmatpush1.msra.mxu0 0.0
        %826 = vmatprep.subr.mxu0 0.0
        %827 = vmatpush1.msra.mxu0 0.0
        %828 = vmatprep.subr.mxu0 0.0
        %829 = vmatpush1.msra.mxu0 0.0
        %830 = vmatprep.subr.mxu0 0.0
        %831 = vmatpush1.msra.mxu0 0.0
        %832 = vmatprep.subr.mxu0 0.0
        %833 = vmatpush1.msra.mxu0 0.0
        %834 = vmatprep.mubr.f32.mxu0 0.0
        %835 = vmatmul.mubr.f32.gmra.mrb[0].mxu0 %v765
        %v836 = vpop.f32.mrb[0].mxu0
        %v837 = vadd.f32 0.0, %v836
        %v838 = vpop.f32.mrb[0].mxu0
        %839 = vmatprep.mubr.f32.mxu0 0.0
        %840 = vmatmul.mubr.f32.gmra.mrb[0].mxu0 %v768
        %v841 = vpop.f32.mrb[0].mxu0
        %v842 = vadd.f32 0.0, %v841
        %v843 = vpop.f32.mrb[0].mxu0
        %844 = vdwg.mxu0
        %v845 = vadd.f32 %v745, %v837
        %v846 = vadd.f32 %v750, %v842
        %v847 = vadd.f32 %v275, %v845
        %v848 = vadd.f32 %v276, %v846
        %v849 = vld [vmem:[%s4] sm:$0x1]
        %v851 = vlaneseq
        %v852 = vshrl.u32 %v851, 7
        %v853 = vsub.s32 0, %v852
        %v854 = vrot.slane %v849, %v853
        %v856 = vadd.f32 %v847, %v854
        %v857 = vadd.f32 %v848, %v854
        %858 = vst.msk [vmem:[%s271] sm:$0xff] %vm277, %v856
        %859 = vst.msk [vmem:[%s271 + $0x8] sm:$0xff] %vm277, %v857
        %s860 = sand.u32 %s141, 1
        %s861 = scalar_lea.sflag [#allocation5], %s860
        %s862 = sand.u32 %s141, 1
        %s863 = smul.addr %s862, 16
        %s864 = scalar_lea.vmem [#allocation9], %s863
        // Predicated region
        $region53: #{tpu_custom_call.1} parent=39 // pred_check
          %p865 = pneg %p151
        $region54: #{tpu_custom_call.1} parent=39 // pred_check_branch
          %867 = sbr.rel (%p865) target = $region56
        $region55: #{tpu_custom_call.1} parent=39 // pred_region
          %s869 = ssub.s32 256, 256
          %870 = vsyncadd %s861, %s869
          %s871 = smul.addr %s23, 2
          %s872 = smul.addr %s871, 128
          %s873 = scalar_lea.hbm %s5, %s872
          %s874 = sshll.u32 %s864, 4
          %s875 = int_to_ptr.vmem [resolvable:$true] %s874
          %880 = dma.vmem_to_hbm [thread:$0]  %s875, 256, %s873, %s861, 128, 128, 8
        $region56: #{tpu_custom_call.1} parent=39 // pred_fallthru
          _
      $region40: #{tpu_custom_call.1} parent=5 // pred_fallthru
        _
      %p881 = scmp.le.s32.totalorder 2, %s18
      // Predicated region
      $region57: #{tpu_custom_call.1} parent=5 // pred_check
        %p882 = pneg %p881
      $region58: #{tpu_custom_call.1} parent=5 // pred_check_branch
        %884 = sbr.rel (%p882) target = $region60
      $region59: #{tpu_custom_call.1} parent=5 // pred_region
        %s885 = ssub.s32 %s18, 2
        // Predicated region
        $region61: #{tpu_custom_call.1} parent=59 // pred_check
          %p886 = pneg %p157
        $region62: #{tpu_custom_call.1} parent=59 // pred_check_branch
          %888 = sbr.rel (%p886) target = $region64
        $region63: #{tpu_custom_call.1} parent=59 // pred_region
          %s889 = sand.u32 %s142, 1
          %s890 = scalar_lea.sflag [#allocation5], %s889
          %s891 = sand.u32 %s142, 1
          %s892 = smul.addr %s891, 16
          %s893 = scalar_lea.vmem [#allocation9], %s892
          %894 = dma.done %s890, 256
        $region64: #{tpu_custom_call.1} parent=59 // pred_fallthru
          _
      $region60: #{tpu_custom_call.1} parent=5 // pred_fallthru
        _
    $region6: #{tpu_custom_call.1} parent=1 // loop_footer
      %s22 = sadd.s32 1, %s18
    $region7: #{tpu_custom_call.1} parent=1 // loop_footer_branch
      %17 = sbr.rel target = $region3
    $region8: #{tpu_custom_call.1} parent=1 // loop_exit
      _
    %895 = vsyncpa [#allocation4], 1
    %s896 = scalar_lea.sflag [#allocation4], 1
    %897 = vsyncpa %s896, 1
    %898 = vsyncpa [#allocation7], 1
    %899 = vsyncpa [#allocation5], 1
    %s900 = scalar_lea.sflag [#allocation5], 1
    %901 = vsyncpa %s900, 1

</llo_original>
